<compile_context>
chip_gen: v7x
topology: tpu7x:2x2x1
jax: 0.10.0
libtpu: 0.0.40
codegen_flags: <defaults>
</compile_context>

<pallas_src>
import jax
import jax.numpy as jnp
from jax.experimental import pallas as pl
from jax.experimental.pallas import tpu as pltpu

F_IN = 21
HIDDEN = (50, 25, 15, 10)
F_OUT = 3
LANE = 128          # padded lane width for the hidden layers
OUT_ROWS = 8        # sublane count of the transposed output (rows 0..2 valid)
TILE_B_MAX = 8192   # batch tile; amortizes ~0.35us/step grid overhead
EPS = 1e-5


def _round_up(n, m):
    return ((n + m - 1) // m) * m


# ---------------------------------------------------------------------------
# Fused (BN folded into W1) 5-layer MLP, batch-tiled, transposed output.
# ---------------------------------------------------------------------------
def position_mlp_kernel(x_ref, w1_ref, wh_ref, bh_ref, w5t_ref, b5_ref, out_ref):
    """One batch tile of the Position forward pass.

    x_ref   : (tile_b, 21)   f32   raw input rows (unpadded features)
    w1_ref  : (21, 128)      f32   BN-folded layer-1 weight (cols >= 50 zero)
    wh_ref  : (3, 128, 128)  bf16  layers 2-4 weights (zero padded)
    bh_ref  : (8, 128)       f32   rows 0..3 = biases of layers 1..4
    w5t_ref : (8, 128)       f32   layer-5 weight, transposed (rows >= 3 zero)
    b5_ref  : (8, 1)         f32   layer-5 bias (rows >= 3 zero)
    out_ref : (8, tile_b)    f32   transposed output tile (rows 0..2 valid)
    """
    # Layer 1 (BatchNorm already folded into w1/b1): f32 matmul with K=21.
    h = jnp.dot(x_ref[...], w1_ref[...], preferred_element_type=jnp.float32)
    h = jnp.maximum(h + bh_ref[0:1, :], 0.0).astype(jnp.bfloat16)

    # Layers 2-4: bf16 MXU inputs, f32 accumulation. Keep the layer-4
    # activations in f32 for the (tiny) f32 layer-5 matmul.
    for j in range(3):
        h = jnp.dot(h, wh_ref[j], preferred_element_type=jnp.float32)
        h = jnp.maximum(h + bh_ref[j + 1:j + 2, :], 0.0)
        if j < 2:
            h = h.astype(jnp.bfloat16)

    # Layer 5, produced transposed so the HBM store is lane-dense along the
    # batch axis: out_t[o, b] = sum_k w5t[o, k] * h[b, k].
    out_t = jax.lax.dot_general(
        w5t_ref[...], h, (((1,), (1,)), ((), ())),
        preferred_element_type=jnp.float32)
    out_ref[...] = (out_t + b5_ref[...]).astype(out_ref.dtype)


# ---------------------------------------------------------------------------
# Wrapper
# ---------------------------------------------------------------------------
@jax.jit
def position_forward(x, params):
    gamma, beta, w1, b1, w2, b2, w3, b3, w4, b4, w5, b5 = params
    B = x.shape[0]
    x = x.astype(jnp.float32)

    tile_b = min(TILE_B_MAX, _round_up(B, 8))
    B_pad = _round_up(B, tile_b)
    n_tiles = B_pad // tile_b

    # --- BatchNorm statistics (training semantics: full batch, biased var).
    # Tiny (B, 21) reduction: XLA is already bandwidth-optimal; the two-pass
    # centered variance avoids E[x^2]-E[x]^2 cancellation.
    mean = jnp.mean(x, axis=0)
    var = jnp.mean(jnp.square(x - mean), axis=0)
    inv_std = jax.lax.rsqrt(var + EPS)
    scale = gamma.reshape(-1) * inv_std               # (21,)
    shift = beta.reshape(-1) - mean * scale           # (21,)

    # --- Fold the BN affine into layer 1 (exact algebra).
    w1_eff = w1 * scale[:, None]                      # (21, 50)
    b1_eff = shift @ w1 + b1.reshape(-1)              # (50,)

    # --- Zero-padded, packed parameters (zero padding keeps the math exact).
    def pad_mat(w, rows, cols):
        return jnp.pad(w, ((0, rows - w.shape[0]), (0, cols - w.shape[1])))

    def pad_vec(v, n):
        v = v.reshape(-1)
        return jnp.pad(v, (0, n - v.shape[0]))

    w1p = pad_mat(w1_eff, F_IN, LANE).astype(jnp.float32)            # (21,128)
    wh = jnp.stack([pad_mat(w2, LANE, LANE),
                    pad_mat(w3, LANE, LANE),
                    pad_mat(w4, LANE, LANE)]).astype(jnp.bfloat16)   # (3,128,128)
    zero_row = jnp.zeros((LANE,), jnp.float32)
    bh = jnp.stack([pad_vec(b1_eff, LANE), pad_vec(b2, LANE),
                    pad_vec(b3, LANE), pad_vec(b4, LANE),
                    zero_row, zero_row, zero_row, zero_row])          # (8,128)
    w5t = pad_mat(w5.T, OUT_ROWS, LANE).astype(jnp.float32)          # (8,128)
    b5p = pad_vec(b5, OUT_ROWS).reshape(OUT_ROWS, 1)                 # (8,1)

    # --- Pad the batch only; features stay 21-wide in HBM.
    x_pad = jnp.pad(x, ((0, B_pad - B), (0, 0)))

    flops = 2 * B_pad * (F_IN * LANE + 3 * LANE * LANE + LANE * OUT_ROWS)
    bytes_accessed = (B_pad * F_IN * 4 + OUT_ROWS * B_pad * 4
                      + F_IN * LANE * 4 + 3 * LANE * LANE * 2
                      + OUT_ROWS * LANE * 4 + OUT_ROWS * LANE * 4 + OUT_ROWS * 4)

    out_t = pl.pallas_call(
        position_mlp_kernel,
        out_shape=jax.ShapeDtypeStruct((OUT_ROWS, B_pad), jnp.float32),
        grid_spec=pltpu.PrefetchScalarGridSpec(
            num_scalar_prefetch=0,
            grid=(n_tiles,),
            in_specs=[
                pl.BlockSpec((tile_b, F_IN), lambda i: (i, 0)),     # x
                pl.BlockSpec((F_IN, LANE), lambda i: (0, 0)),       # w1_eff
                pl.BlockSpec((3, LANE, LANE), lambda i: (0, 0, 0)),  # w2..w4
                pl.BlockSpec((OUT_ROWS, LANE), lambda i: (0, 0)),   # b1..b4
                pl.BlockSpec((OUT_ROWS, LANE), lambda i: (0, 0)),   # w5^T
                pl.BlockSpec((OUT_ROWS, 1), lambda i: (0, 0)),      # b5
            ],
            out_specs=pl.BlockSpec((OUT_ROWS, tile_b), lambda i: (0, i))),
        compiler_params=pltpu.CompilerParams(
            dimension_semantics=("parallel",),
            vmem_limit_bytes=48 * 1024 * 1024),
        cost_estimate=pl.CostEstimate(flops=flops, transcendentals=0,
                                      bytes_accessed=bytes_accessed),
    )(x_pad, w1p, wh, bh, w5t, b5p)

    # Only rows 0..2 (features) / columns 0..B-1 (batch) are valid.
    return out_t[:F_OUT, :B].T


# ---------------------------------------------------------------------------
# Parameter init (PyTorch nn.Linear / BatchNorm1d defaults) and JAX reference
# ---------------------------------------------------------------------------
def init_params(key):
    """nn.Linear default init U(-1/sqrt(fan_in), 1/sqrt(fan_in)); weights are
    stored transposed ([in, out]) relative to PyTorch's [out, in]."""
    dims = [(F_IN, 50), (50, 25), (25, 15), (15, 10), (10, F_OUT)]
    params = [jnp.ones((F_IN,), jnp.float32),      # BN gamma
              jnp.zeros((F_IN,), jnp.float32)]     # BN beta
    for fan_in, fan_out in dims:
        key, kw, kb = jax.random.split(key, 3)
        bound = 1.0 / jnp.sqrt(jnp.float32(fan_in))
        params.append(jax.random.uniform(kw, (fan_in, fan_out), jnp.float32, -bound, bound))
        params.append(jax.random.uniform(kb, (fan_out,), jnp.float32, -bound, bound))
    return tuple(params)


def reference_forward(x, params):
    gamma, beta, w1, b1, w2, b2, w3, b3, w4, b4, w5, b5 = params
    mean = jnp.mean(x, axis=0, keepdims=True)
    var = jnp.mean((x - mean) ** 2, axis=0, keepdims=True)   # biased
    h = (x - mean) / jnp.sqrt(var + EPS) * gamma + beta
    h = jnp.maximum(h @ w1 + b1, 0.0)
    h = jnp.maximum(h @ w2 + b2, 0.0)
    h = jnp.maximum(h @ w3 + b3, 0.0)
    h = jnp.maximum(h @ w4 + b4, 0.0)
    return h @ w5 + b5


if __name__ == "__main__":
    key = jax.random.PRNGKey(0)
    key, kx = jax.random.split(key)
    B = 16
    x = jax.random.normal(kx, (B, F_IN), jnp.float32)
    params = init_params(key)

    out = position_forward(x, params)
    out = jax.block_until_ready(out)

    ref = reference_forward(x, params)
    assert out.shape == (B, F_OUT)
    # Layers 2-4 use bf16 MXU inputs (f32 accumulation), so compare with a
    # bf16-appropriate tolerance (all-f32 matches to ~1e-5).
    assert jnp.allclose(out, ref, atol=2e-2, rtol=2e-2), "mismatch vs reference"
    print("KERNEL_OK")
</pallas_src>

<mosaic_0001>
module attributes {stable_mosaic.version = 11 : i64} {
  func.func @position_mlp_kernel(%arg0: i32, %arg1: memref<16x21xf32, #tpu.memory_space<vmem>>, %arg2: memref<21x128xf32, #tpu.memory_space<vmem>>, %arg3: memref<3x128x128xbf16, #tpu.memory_space<vmem>>, %arg4: memref<8x128xf32, #tpu.memory_space<vmem>>, %arg5: memref<8x128xf32, #tpu.memory_space<vmem>>, %arg6: memref<8x1xf32, #tpu.memory_space<vmem>>, %arg7: memref<8x16xf32, #tpu.memory_space<vmem>>) attributes {dimension_semantics = [#tpu.dimension_semantics<parallel>], iteration_bounds = array<i64: 1>, scalar_prefetch = 0 : i64, scratch_operands = 0 : i64, tpu.core_type = #tpu.core_type<tc>, window_params = [{transform_indices = @transform_0, window_bounds = array<i64: 16, 21>}, {pipeline_mode = #tpu.pipeline_mode<synchronous>, transform_indices = @transform_1, window_bounds = array<i64: 21, 128>}, {pipeline_mode = #tpu.pipeline_mode<synchronous>, transform_indices = @transform_2, window_bounds = array<i64: 3, 128, 128>}, {pipeline_mode = #tpu.pipeline_mode<synchronous>, transform_indices = @transform_3, window_bounds = array<i64: 8, 128>}, {pipeline_mode = #tpu.pipeline_mode<synchronous>, transform_indices = @transform_4, window_bounds = array<i64: 8, 128>}, {pipeline_mode = #tpu.pipeline_mode<synchronous>, transform_indices = @transform_5, window_bounds = array<i64: 8, 1>}, {transform_indices = @transform_6, window_bounds = array<i64: 8, 16>}]} {
    %c0 = arith.constant 0 : index
    %c0_0 = arith.constant 0 : index
    %0 = vector.load %arg1[%c0, %c0_0] : memref<16x21xf32, #tpu.memory_space<vmem>>, vector<16x21xf32>
    %c0_1 = arith.constant 0 : index
    %c0_2 = arith.constant 0 : index
    %1 = vector.load %arg2[%c0_1, %c0_2] : memref<21x128xf32, #tpu.memory_space<vmem>>, vector<21x128xf32>
    %cst = arith.constant dense<0.000000e+00> : vector<16x128xf32>
    %2 = tpu.matmul %0, %1, %cst {dimension_numbers = #tpu.dot_dimension_numbers<[1], [0], [0], [1], [0, 0, 1, 1], [], []>} : vector<16x21xf32>, vector<21x128xf32>, vector<16x128xf32> -> vector<16x128xf32>
    %c0_3 = arith.constant 0 : index
    %c0_4 = arith.constant 0 : index
    %3 = vector.load %arg4[%c0_3, %c0_4] : memref<8x128xf32, #tpu.memory_space<vmem>>, vector<1x128xf32>
    %4 = vector.broadcast %3 : vector<1x128xf32> to vector<16x128xf32>
    %5 = arith.addf %2, %4 : vector<16x128xf32>
    %cst_5 = arith.constant 0.000000e+00 : f32
    %6 = vector.broadcast %cst_5 : f32 to vector<16x128xf32>
    %7 = arith.maximumf %5, %6 : vector<16x128xf32>
    %8 = arith.truncf %7 : vector<16x128xf32> to vector<16x128xbf16>
    %c0_6 = arith.constant 0 : index
    %c0_7 = arith.constant 0 : index
    %c0_8 = arith.constant 0 : index
    %9 = vector.load %arg3[%c0_6, %c0_7, %c0_8] : memref<3x128x128xbf16, #tpu.memory_space<vmem>>, vector<1x128x128xbf16>
    %10 = vector.shape_cast %9 : vector<1x128x128xbf16> to vector<128x128xbf16>
    %cst_9 = arith.constant dense<0.000000e+00> : vector<16x128xf32>
    %11 = tpu.matmul %8, %10, %cst_9 {dimension_numbers = #tpu.dot_dimension_numbers<[1], [0], [0], [1], [0, 0, 1, 1], [], []>} : vector<16x128xbf16>, vector<128x128xbf16>, vector<16x128xf32> -> vector<16x128xf32>
    %c1 = arith.constant 1 : index
    %c0_10 = arith.constant 0 : index
    %12 = vector.load %arg4[%c1, %c0_10] : memref<8x128xf32, #tpu.memory_space<vmem>>, vector<1x128xf32>
    %13 = vector.broadcast %12 : vector<1x128xf32> to vector<16x128xf32>
    %14 = arith.addf %11, %13 : vector<16x128xf32>
    %cst_11 = arith.constant 0.000000e+00 : f32
    %15 = vector.broadcast %cst_11 : f32 to vector<16x128xf32>
    %16 = arith.maximumf %14, %15 : vector<16x128xf32>
    %17 = arith.truncf %16 : vector<16x128xf32> to vector<16x128xbf16>
    %c1_12 = arith.constant 1 : index
    %c0_13 = arith.constant 0 : index
    %c0_14 = arith.constant 0 : index
    %18 = vector.load %arg3[%c1_12, %c0_13, %c0_14] : memref<3x128x128xbf16, #tpu.memory_space<vmem>>, vector<1x128x128xbf16>
    %19 = vector.shape_cast %18 : vector<1x128x128xbf16> to vector<128x128xbf16>
    %cst_15 = arith.constant dense<0.000000e+00> : vector<16x128xf32>
    %20 = tpu.matmul %17, %19, %cst_15 {dimension_numbers = #tpu.dot_dimension_numbers<[1], [0], [0], [1], [0, 0, 1, 1], [], []>} : vector<16x128xbf16>, vector<128x128xbf16>, vector<16x128xf32> -> vector<16x128xf32>
    %c2 = arith.constant 2 : index
    %c0_16 = arith.constant 0 : index
    %21 = vector.load %arg4[%c2, %c0_16] : memref<8x128xf32, #tpu.memory_space<vmem>>, vector<1x128xf32>
    %22 = vector.broadcast %21 : vector<1x128xf32> to vector<16x128xf32>
    %23 = arith.addf %20, %22 : vector<16x128xf32>
    %cst_17 = arith.constant 0.000000e+00 : f32
    %24 = vector.broadcast %cst_17 : f32 to vector<16x128xf32>
    %25 = arith.maximumf %23, %24 : vector<16x128xf32>
    %26 = arith.truncf %25 : vector<16x128xf32> to vector<16x128xbf16>
    %c2_18 = arith.constant 2 : index
    %c0_19 = arith.constant 0 : index
    %c0_20 = arith.constant 0 : index
    %27 = vector.load %arg3[%c2_18, %c0_19, %c0_20] : memref<3x128x128xbf16, #tpu.memory_space<vmem>>, vector<1x128x128xbf16>
    %28 = vector.shape_cast %27 : vector<1x128x128xbf16> to vector<128x128xbf16>
    %cst_21 = arith.constant dense<0.000000e+00> : vector<16x128xf32>
    %29 = tpu.matmul %26, %28, %cst_21 {dimension_numbers = #tpu.dot_dimension_numbers<[1], [0], [0], [1], [0, 0, 1, 1], [], []>} : vector<16x128xbf16>, vector<128x128xbf16>, vector<16x128xf32> -> vector<16x128xf32>
    %c3 = arith.constant 3 : index
    %c0_22 = arith.constant 0 : index
    %30 = vector.load %arg4[%c3, %c0_22] : memref<8x128xf32, #tpu.memory_space<vmem>>, vector<1x128xf32>
    %31 = vector.broadcast %30 : vector<1x128xf32> to vector<16x128xf32>
    %32 = arith.addf %29, %31 : vector<16x128xf32>
    %cst_23 = arith.constant 0.000000e+00 : f32
    %33 = vector.broadcast %cst_23 : f32 to vector<16x128xf32>
    %34 = arith.maximumf %32, %33 : vector<16x128xf32>
    %c0_24 = arith.constant 0 : index
    %c0_25 = arith.constant 0 : index
    %35 = vector.load %arg5[%c0_24, %c0_25] : memref<8x128xf32, #tpu.memory_space<vmem>>, vector<8x128xf32>
    %cst_26 = arith.constant dense<0.000000e+00> : vector<8x16xf32>
    %36 = tpu.matmul %35, %34, %cst_26 {dimension_numbers = #tpu.dot_dimension_numbers<[1], [1], [0], [0], [0, 0, 1, 0], [], []>} : vector<8x128xf32>, vector<16x128xf32>, vector<8x16xf32> -> vector<8x16xf32>
    %c0_27 = arith.constant 0 : index
    %c0_28 = arith.constant 0 : index
    %37 = vector.load %arg6[%c0_27, %c0_28] : memref<8x1xf32, #tpu.memory_space<vmem>>, vector<8x1xf32>
    %38 = vector.broadcast %37 : vector<8x1xf32> to vector<8x16xf32>
    %39 = arith.addf %36, %38 : vector<8x16xf32>
    %c0_29 = arith.constant 0 : index
    %c0_30 = arith.constant 0 : index
    %40 = vector.load %arg7[%c0_29, %c0_30] : memref<8x16xf32, #tpu.memory_space<vmem>>, vector<8x16xf32>
    tpu.vector_store %arg7[%c0_29, %c0_30], %39 {strides = array<i32>} : memref<8x16xf32, #tpu.memory_space<vmem>>, vector<8x16xf32>,
    return
  }
  func.func @transform_0(%arg0: i32) -> (i32, i32) {
    %c0_i32 = arith.constant 0 : i32
    %c0_i32_0 = arith.constant 0 : i32
    return %arg0, %c0_i32 : i32, i32
  }
  func.func @transform_1(%arg0: i32) -> (i32, i32) {
    %c0_i32 = arith.constant 0 : i32
    %c0_i32_0 = arith.constant 0 : i32
    %c0_i32_1 = arith.constant 0 : i32
    return %c0_i32, %c0_i32_0 : i32, i32
  }
  func.func @transform_2(%arg0: i32) -> (i32, i32, i32) {
    %c0_i32 = arith.constant 0 : i32
    %c0_i32_0 = arith.constant 0 : i32
    %c0_i32_1 = arith.constant 0 : i32
    %c0_i32_2 = arith.constant 0 : i32
    return %c0_i32, %c0_i32_0, %c0_i32_1 : i32, i32, i32
  }
  func.func @transform_3(%arg0: i32) -> (i32, i32) {
    %c0_i32 = arith.constant 0 : i32
    %c0_i32_0 = arith.constant 0 : i32
    %c0_i32_1 = arith.constant 0 : i32
    return %c0_i32, %c0_i32_0 : i32, i32
  }
  func.func @transform_4(%arg0: i32) -> (i32, i32) {
    %c0_i32 = arith.constant 0 : i32
    %c0_i32_0 = arith.constant 0 : i32
    %c0_i32_1 = arith.constant 0 : i32
    return %c0_i32, %c0_i32_0 : i32, i32
  }
  func.func @transform_5(%arg0: i32) -> (i32, i32) {
    %c0_i32 = arith.constant 0 : i32
    %c0_i32_0 = arith.constant 0 : i32
    %c0_i32_1 = arith.constant 0 : i32
    return %c0_i32, %c0_i32_0 : i32, i32
  }
  func.func @transform_6(%arg0: i32) -> (i32, i32) {
    %c0_i32 = arith.constant 0 : i32
    %c0_i32_0 = arith.constant 0 : i32
    return %c0_i32, %arg0 : i32, i32
  }
}

</mosaic_0001>

<llo_original>
// kernel: position_forward.1
$region0: #{position_forward.1}
  #allocation0 [shape = 'u32[]', space=smem, size = 0x4, offset = 0x4, fixed_abs, tag = 'smem constant byte address 0x4 - core index']
  #allocation1 [shape = 'u32[144,128]{1,0:T(1,128)}', space=vmem, size = 0x12000, scoped, tag = 'internal scratch']
  %s0 = inlined_call_operand.vmem [shape: f32[16,21], index: 0, kind: input, shape index: {}]
  %s1 = inlined_call_operand.vmem [shape: f32[21,128], index: 1, kind: input, shape index: {}]
  %s2 = inlined_call_operand.vmem [shape: bf16[3,128,128], index: 2, kind: input, shape index: {}]
  %s3 = inlined_call_operand.vmem [shape: f32[8,128], index: 3, kind: input, shape index: {}]
  %s4 = inlined_call_operand.vmem [shape: f32[8,128], index: 4, kind: input, shape index: {}]
  %s5 = inlined_call_operand.vmem [shape: f32[8,1], index: 5, kind: input, shape index: {}]
  %s6 = inlined_call_operand.vmem [shape: f32[8,16], index: 6, kind: output, shape index: {}]
  %s7 = sld [smem:[#allocation0]]
  $region34: #{position_forward.1} parent=0
    _
  %s9 = ssub.s32 1, %s7
  %s10 = scalar_select 0, %s9, %s7
  // Predicated region
  $region2: #{position_forward.1} parent=0 // pred_check
    _
  $region3: #{position_forward.1} parent=0 // pred_check_branch
    %12 = sbr.rel (0) target = $region5
  $region4: #{position_forward.1} parent=0 // pred_region
    _
  $region5: #{position_forward.1} parent=0 // pred_fallthru
    _
  // Predicated region
  $region6: #{position_forward.1} parent=0 // pred_check
    _
  $region7: #{position_forward.1} parent=0 // pred_check_branch
    %14 = sbr.rel (0) target = $region9
  $region8: #{position_forward.1} parent=0 // pred_region
    _
  $region9: #{position_forward.1} parent=0 // pred_fallthru
    _
  // Predicated region
  $region10: #{position_forward.1} parent=0 // pred_check
    _
  $region11: #{position_forward.1} parent=0 // pred_check_branch
    %16 = sbr.rel (0) target = $region13
  $region12: #{position_forward.1} parent=0 // pred_region
    _
  $region13: #{position_forward.1} parent=0 // pred_fallthru
    _
  // Predicated region
  $region14: #{position_forward.1} parent=0 // pred_check
    _
  $region15: #{position_forward.1} parent=0 // pred_check_branch
    %18 = sbr.rel (0) target = $region17
  $region16: #{position_forward.1} parent=0 // pred_region
    _
  $region17: #{position_forward.1} parent=0 // pred_fallthru
    _
  // Predicated region
  $region18: #{position_forward.1} parent=0 // pred_check
    _
  $region19: #{position_forward.1} parent=0 // pred_check_branch
    %20 = sbr.rel (0) target = $region21
  $region20: #{position_forward.1} parent=0 // pred_region
    _
  $region21: #{position_forward.1} parent=0 // pred_fallthru
    _
  // Predicated region
  $region22: #{position_forward.1} parent=0 // pred_check
    _
  $region23: #{position_forward.1} parent=0 // pred_check_branch
    %22 = sbr.rel (0) target = $region25
  $region24: #{position_forward.1} parent=0 // pred_region
    _
  $region25: #{position_forward.1} parent=0 // pred_fallthru
    _
  %v24 = vld [vmem:[%s0] sm:$0xff]
  %v25 = vld [vmem:[%s0 + $0x8] sm:$0xff]
  %v26 = vld [vmem:[%s1] sm:$0xff]
  %v27 = vld [vmem:[%s1 + $0x8] sm:$0xff]
  %v28 = vld [vmem:[%s1 + $0x10] sm:$0x1f]
  %v29 = vld [vmem:[%s3] sm:$0x1]
  %v30 = vlaneseq
  %v31 = vshrl.u32 %v30, 7
  %v32 = vsub.s32 0, %v31
  %v33 = vrot.slane %v29, %v32
  %vm34 = vcmask 171008
  %v36 = vsel %vm34, %v24, 0
  %v39 = vsel %vm34, %v25, 0
  %vm41 = vcmask 1044480
  %v43 = vsel %vm41, %v28, 0
  %45 = vmatprep.subr.mxu0 0.0
  %46 = vmatpush1.msra.mxu0 %v26
  %47 = vmatprep.subr.mxu0 0.0
  %48 = vmatpush1.msra.mxu0 %v27
  %49 = vmatprep.subr.mxu0 0.0
  %50 = vmatpush1.msra.mxu0 %v43
  %51 = vmatprep.subr.mxu0 0.0
  %52 = vmatpush1.msra.mxu0 0.0
  %53 = vmatprep.subr.mxu0 0.0
  %54 = vmatpush1.msra.mxu0 0.0
  %55 = vmatprep.subr.mxu0 0.0
  %56 = vmatpush1.msra.mxu0 0.0
  %57 = vmatprep.subr.mxu0 0.0
  %58 = vmatpush1.msra.mxu0 0.0
  %59 = vmatprep.subr.mxu0 0.0
  %60 = vmatpush1.msra.mxu0 0.0
  %61 = vmatprep.subr.mxu0 0.0
  %62 = vmatpush1.msra.mxu0 0.0
  %63 = vmatprep.subr.mxu0 0.0
  %64 = vmatpush1.msra.mxu0 0.0
  %65 = vmatprep.subr.mxu0 0.0
  %66 = vmatpush1.msra.mxu0 0.0
  %67 = vmatprep.subr.mxu0 0.0
  %68 = vmatpush1.msra.mxu0 0.0
  %69 = vmatprep.subr.mxu0 0.0
  %70 = vmatpush1.msra.mxu0 0.0
  %71 = vmatprep.subr.mxu0 0.0
  %72 = vmatpush1.msra.mxu0 0.0
  %73 = vmatprep.subr.mxu0 0.0
  %74 = vmatpush1.msra.mxu0 0.0
  %75 = vmatprep.subr.mxu0 0.0
  %76 = vmatpush1.msra.mxu0 0.0
  %77 = vmatprep.subr.mxu0 0.0
  %78 = vmatpush1.msra.mxu0 0.0
  %79 = vmatprep.subr.mxu0 0.0
  %80 = vmatpush1.msra.mxu0 0.0
  %81 = vmatprep.subr.mxu0 0.0
  %82 = vmatpush1.msra.mxu0 0.0
  %83 = vmatprep.subr.mxu0 0.0
  %84 = vmatpush1.msra.mxu0 0.0
  %85 = vmatprep.subr.mxu0 0.0
  %86 = vmatpush1.msra.mxu0 0.0
  %87 = vmatprep.subr.mxu0 0.0
  %88 = vmatpush1.msra.mxu0 0.0
  %89 = vmatprep.subr.mxu0 0.0
  %90 = vmatpush1.msra.mxu0 0.0
  %91 = vmatprep.subr.mxu0 0.0
  %92 = vmatpush1.msra.mxu0 0.0
  %93 = vmatprep.subr.mxu0 0.0
  %94 = vmatpush1.msra.mxu0 0.0
  %95 = vmatprep.subr.mxu0 0.0
  %96 = vmatpush1.msra.mxu0 0.0
  %97 = vmatprep.subr.mxu0 0.0
  %98 = vmatpush1.msra.mxu0 0.0
  %99 = vmatprep.subr.mxu0 0.0
  %100 = vmatpush1.msra.mxu0 0.0
  %101 = vmatprep.subr.mxu0 0.0
  %102 = vmatpush1.msra.mxu0 0.0
  %103 = vmatprep.subr.mxu0 0.0
  %104 = vmatpush1.msra.mxu0 0.0
  %105 = vmatprep.subr.mxu0 0.0
  %106 = vmatpush1.msra.mxu0 0.0
  %107 = vmatprep.subr.mxu0 0.0
  %108 = vmatpush1.msra.mxu0 0.0
  %109 = vmatprep.mubr.f32.mxu0 0.0
  %110 = vmatmul.mubr.f32.gmra.mrb[0].mxu0 %v36
  %v111 = vpop.f32.mrb[0].mxu0
  %v112 = vadd.f32 %v33, %v111
  %v113 = vpop.f32.mrb[0].mxu0
  %114 = vmatprep.mubr.f32.mxu0 0.0
  %115 = vmatmul.mubr.f32.gmra.mrb[0].mxu0 %v39
  %v116 = vpop.f32.mrb[0].mxu0
  %v117 = vadd.f32 %v33, %v116
  %v118 = vpop.f32.mrb[0].mxu0
  %119 = vdwg.mxu0
  %v120 = vmax.f32 %v112, 0.0
  %v121 = vmax.f32 %v117, 0.0
  %v122 = vpack.c.bf16 %v121, %v120
  %v123 = vld [vmem:[%s2] sm:$0xf]
  %v124 = vld [vmem:[%s2 + $0x4] sm:$0xf]
  %v125 = vld [vmem:[%s2 + $0x8] sm:$0xf]
  %v126 = vld [vmem:[%s2 + $0xc] sm:$0xf]
  %v127 = vld [vmem:[%s2 + $0x10] sm:$0xf]
  %v128 = vld [vmem:[%s2 + $0x14] sm:$0xf]
  %v129 = vld [vmem:[%s2 + $0x18] sm:$0xf]
  %v130 = vld [vmem:[%s2 + $0x1c] sm:$0xf]
  %v131 = vld [vmem:[%s2 + $0x20] sm:$0xf]
  %v132 = vld [vmem:[%s2 + $0x24] sm:$0xf]
  %v133 = vld [vmem:[%s2 + $0x28] sm:$0xf]
  %v134 = vld [vmem:[%s2 + $0x2c] sm:$0xf]
  %v135 = vld [vmem:[%s2 + $0x30] sm:$0xf]
  %v136 = vld [vmem:[%s2 + $0x34] sm:$0xf]
  %v137 = vld [vmem:[%s2 + $0x38] sm:$0xf]
  %v138 = vld [vmem:[%s2 + $0x3c] sm:$0xf]
  %v139 = vld [vmem:[%s3 + $0x1] sm:$0x1]
  %v140 = vlaneseq
  %v141 = vshrl.u32 %v140, 7
  %v142 = vsub.s32 0, %v141
  %v143 = vrot.slane %v139, %v142
  %v160 = vunpack.c.l.b16 %v123
  %v161 = vunpack.c.l.b16 %v124
  %v162 = vunpack.c.l.b16 %v125
  %v163 = vunpack.c.l.b16 %v126
  %v164 = vunpack.c.l.b16 %v127
  %v165 = vunpack.c.l.b16 %v128
  %v166 = vunpack.c.l.b16 %v129
  %v167 = vunpack.c.l.b16 %v130
  %v168 = vunpack.c.l.b16 %v131
  %v169 = vunpack.c.l.b16 %v132
  %v170 = vunpack.c.l.b16 %v133
  %v171 = vunpack.c.l.b16 %v134
  %v172 = vunpack.c.l.b16 %v135
  %v173 = vunpack.c.l.b16 %v136
  %v174 = vunpack.c.l.b16 %v137
  %v175 = vunpack.c.l.b16 %v138
  %v176 = vpack.c.b16 %v161, %v160
  %v177 = vpack.c.b16 %v163, %v162
  %v178 = vpack.c.b16 %v165, %v164
  %v179 = vpack.c.b16 %v167, %v166
  %v180 = vpack.c.b16 %v169, %v168
  %v181 = vpack.c.b16 %v171, %v170
  %v182 = vpack.c.b16 %v173, %v172
  %v183 = vpack.c.b16 %v175, %v174
  %192 = vmatprep.subr.bf16.mxu0 0
  %193 = vmatpush1.bf16.msra.mxu0 %v176
  %194 = vmatprep.subr.bf16.mxu0 0
  %195 = vmatpush1.bf16.msra.mxu0 %v177
  %196 = vmatprep.subr.bf16.mxu0 0
  %197 = vmatpush1.bf16.msra.mxu0 %v178
  %198 = vmatprep.subr.bf16.mxu0 0
  %199 = vmatpush1.bf16.msra.mxu0 %v179
  %200 = vmatprep.subr.bf16.mxu0 0
  %201 = vmatpush1.bf16.msra.mxu0 %v180
  %202 = vmatprep.subr.bf16.mxu0 0
  %203 = vmatpush1.bf16.msra.mxu0 %v181
  %204 = vmatprep.subr.bf16.mxu0 0
  %205 = vmatpush1.bf16.msra.mxu0 %v182
  %206 = vmatprep.subr.bf16.mxu0 0
  %207 = vmatpush1.bf16.msra.mxu0 %v183
  %208 = vmatprep.subr.bf16.mxu0 0
  %209 = vmatpush1.bf16.msra.mxu0 0
  %210 = vmatprep.subr.bf16.mxu0 0
  %211 = vmatpush1.bf16.msra.mxu0 0
  %212 = vmatprep.subr.bf16.mxu0 0
  %213 = vmatpush1.bf16.msra.mxu0 0
  %214 = vmatprep.subr.bf16.mxu0 0
  %215 = vmatpush1.bf16.msra.mxu0 0
  %216 = vmatprep.subr.bf16.mxu0 0
  %217 = vmatpush1.bf16.msra.mxu0 0
  %218 = vmatprep.subr.bf16.mxu0 0
  %219 = vmatpush1.bf16.msra.mxu0 0
  %220 = vmatprep.subr.bf16.mxu0 0
  %221 = vmatpush1.bf16.msra.mxu0 0
  %222 = vmatprep.subr.bf16.mxu0 0
  %223 = vmatpush1.bf16.msra.mxu0 0
  %224 = vmatprep.mubr.bf16.mxu0 0
  %225 = vmatmul.mubr.bf16.gmra.mrb[0].mxu0 %v122
  %v226 = vpop.f32.mrb[0].mxu0
  %v227 = vadd.f32 %v143, %v226
  %v228 = vpop.f32.mrb[0].mxu0
  %v229 = vpop.f32.mrb[0].mxu0
  %v230 = vadd.f32 %v143, %v229
  %v231 = vpop.f32.mrb[0].mxu0
  %232 = vdwg.mxu0
  %v233 = vmax.f32 %v227, 0.0
  %v234 = vmax.f32 %v230, 0.0
  %v235 = vpack.c.bf16 %v234, %v233
  %s236 = scalar_lea.vmem %s2, 64
  %v237 = vld [vmem:[%s236] sm:$0xf]
  %v238 = vld [vmem:[%s236 + $0x4] sm:$0xf]
  %v239 = vld [vmem:[%s236 + $0x8] sm:$0xf]
  %v240 = vld [vmem:[%s236 + $0xc] sm:$0xf]
  %v241 = vld [vmem:[%s236 + $0x10] sm:$0xf]
  %v242 = vld [vmem:[%s236 + $0x14] sm:$0xf]
  %v243 = vld [vmem:[%s236 + $0x18] sm:$0xf]
  %v244 = vld [vmem:[%s236 + $0x1c] sm:$0xf]
  %v245 = vld [vmem:[%s236 + $0x20] sm:$0xf]
  %v246 = vld [vmem:[%s236 + $0x24] sm:$0xf]
  %v247 = vld [vmem:[%s236 + $0x28] sm:$0xf]
  %v248 = vld [vmem:[%s236 + $0x2c] sm:$0xf]
  %v249 = vld [vmem:[%s236 + $0x30] sm:$0xf]
  %v250 = vld [vmem:[%s236 + $0x34] sm:$0xf]
  %v251 = vld [vmem:[%s236 + $0x38] sm:$0xf]
  %v252 = vld [vmem:[%s236 + $0x3c] sm:$0xf]
  %v253 = vld [vmem:[%s3 + $0x2] sm:$0x1]
  %v254 = vlaneseq
  %v255 = vshrl.u32 %v254, 7
  %v256 = vsub.s32 0, %v255
  %v257 = vrot.slane %v253, %v256
  %v274 = vunpack.c.l.b16 %v237
  %v275 = vunpack.c.l.b16 %v238
  %v276 = vunpack.c.l.b16 %v239
  %v277 = vunpack.c.l.b16 %v240
  %v278 = vunpack.c.l.b16 %v241
  %v279 = vunpack.c.l.b16 %v242
  %v280 = vunpack.c.l.b16 %v243
  %v281 = vunpack.c.l.b16 %v244
  %v282 = vunpack.c.l.b16 %v245
  %v283 = vunpack.c.l.b16 %v246
  %v284 = vunpack.c.l.b16 %v247
  %v285 = vunpack.c.l.b16 %v248
  %v286 = vunpack.c.l.b16 %v249
  %v287 = vunpack.c.l.b16 %v250
  %v288 = vunpack.c.l.b16 %v251
  %v289 = vunpack.c.l.b16 %v252
  %v290 = vpack.c.b16 %v275, %v274
  %v291 = vpack.c.b16 %v277, %v276
  %v292 = vpack.c.b16 %v279, %v278
  %v293 = vpack.c.b16 %v281, %v280
  %v294 = vpack.c.b16 %v283, %v282
  %v295 = vpack.c.b16 %v285, %v284
  %v296 = vpack.c.b16 %v287, %v286
  %v297 = vpack.c.b16 %v289, %v288
  %306 = vmatprep.subr.bf16.mxu0 0
  %307 = vmatpush1.bf16.msra.mxu0 %v290
  %308 = vmatprep.subr.bf16.mxu0 0
  %309 = vmatpush1.bf16.msra.mxu0 %v291
  %310 = vmatprep.subr.bf16.mxu0 0
  %311 = vmatpush1.bf16.msra.mxu0 %v292
  %312 = vmatprep.subr.bf16.mxu0 0
  %313 = vmatpush1.bf16.msra.mxu0 %v293
  %314 = vmatprep.subr.bf16.mxu0 0
  %315 = vmatpush1.bf16.msra.mxu0 %v294
  %316 = vmatprep.subr.bf16.mxu0 0
  %317 = vmatpush1.bf16.msra.mxu0 %v295
  %318 = vmatprep.subr.bf16.mxu0 0
  %319 = vmatpush1.bf16.msra.mxu0 %v296
  %320 = vmatprep.subr.bf16.mxu0 0
  %321 = vmatpush1.bf16.msra.mxu0 %v297
  %322 = vmatprep.subr.bf16.mxu0 0
  %323 = vmatpush1.bf16.msra.mxu0 0
  %324 = vmatprep.subr.bf16.mxu0 0
  %325 = vmatpush1.bf16.msra.mxu0 0
  %326 = vmatprep.subr.bf16.mxu0 0
  %327 = vmatpush1.bf16.msra.mxu0 0
  %328 = vmatprep.subr.bf16.mxu0 0
  %329 = vmatpush1.bf16.msra.mxu0 0
  %330 = vmatprep.subr.bf16.mxu0 0
  %331 = vmatpush1.bf16.msra.mxu0 0
  %332 = vmatprep.subr.bf16.mxu0 0
  %333 = vmatpush1.bf16.msra.mxu0 0
  %334 = vmatprep.subr.bf16.mxu0 0
  %335 = vmatpush1.bf16.msra.mxu0 0
  %336 = vmatprep.subr.bf16.mxu0 0
  %337 = vmatpush1.bf16.msra.mxu0 0
  %338 = vmatprep.mubr.bf16.mxu0 0
  %339 = vmatmul.mubr.bf16.gmra.mrb[0].mxu0 %v235
  %v340 = vpop.f32.mrb[0].mxu0
  %v341 = vadd.f32 %v257, %v340
  %v342 = vpop.f32.mrb[0].mxu0
  %v343 = vpop.f32.mrb[0].mxu0
  %v344 = vadd.f32 %v257, %v343
  %v345 = vpop.f32.mrb[0].mxu0
  %346 = vdwg.mxu0
  %v347 = vmax.f32 %v341, 0.0
  %v348 = vmax.f32 %v344, 0.0
  %v349 = vpack.c.bf16 %v348, %v347
  %s350 = scalar_lea.vmem %s2, 128
  %v351 = vld [vmem:[%s350] sm:$0xf]
  %v352 = vld [vmem:[%s350 + $0x4] sm:$0xf]
  %v353 = vld [vmem:[%s350 + $0x8] sm:$0xf]
  %v354 = vld [vmem:[%s350 + $0xc] sm:$0xf]
  %v355 = vld [vmem:[%s350 + $0x10] sm:$0xf]
  %v356 = vld [vmem:[%s350 + $0x14] sm:$0xf]
  %v357 = vld [vmem:[%s350 + $0x18] sm:$0xf]
  %v358 = vld [vmem:[%s350 + $0x1c] sm:$0xf]
  %v359 = vld [vmem:[%s350 + $0x20] sm:$0xf]
  %v360 = vld [vmem:[%s350 + $0x24] sm:$0xf]
  %v361 = vld [vmem:[%s350 + $0x28] sm:$0xf]
  %v362 = vld [vmem:[%s350 + $0x2c] sm:$0xf]
  %v363 = vld [vmem:[%s350 + $0x30] sm:$0xf]
  %v364 = vld [vmem:[%s350 + $0x34] sm:$0xf]
  %v365 = vld [vmem:[%s350 + $0x38] sm:$0xf]
  %v366 = vld [vmem:[%s350 + $0x3c] sm:$0xf]
  %v367 = vld [vmem:[%s3 + $0x3] sm:$0x1]
  %v368 = vlaneseq
  %v369 = vshrl.u32 %v368, 7
  %v370 = vsub.s32 0, %v369
  %v371 = vrot.slane %v367, %v370
  %v388 = vunpack.c.l.b16 %v351
  %v389 = vunpack.c.l.b16 %v352
  %v390 = vunpack.c.l.b16 %v353
  %v391 = vunpack.c.l.b16 %v354
  %v392 = vunpack.c.l.b16 %v355
  %v393 = vunpack.c.l.b16 %v356
  %v394 = vunpack.c.l.b16 %v357
  %v395 = vunpack.c.l.b16 %v358
  %v396 = vunpack.c.l.b16 %v359
  %v397 = vunpack.c.l.b16 %v360
  %v398 = vunpack.c.l.b16 %v361
  %v399 = vunpack.c.l.b16 %v362
  %v400 = vunpack.c.l.b16 %v363
  %v401 = vunpack.c.l.b16 %v364
  %v402 = vunpack.c.l.b16 %v365
  %v403 = vunpack.c.l.b16 %v366
  %v404 = vpack.c.b16 %v389, %v388
  %v405 = vpack.c.b16 %v391, %v390
  %v406 = vpack.c.b16 %v393, %v392
  %v407 = vpack.c.b16 %v395, %v394
  %v408 = vpack.c.b16 %v397, %v396
  %v409 = vpack.c.b16 %v399, %v398
  %v410 = vpack.c.b16 %v401, %v400
  %v411 = vpack.c.b16 %v403, %v402
  %420 = vmatprep.subr.bf16.mxu0 0
  %421 = vmatpush1.bf16.msra.mxu0 %v404
  %422 = vmatprep.subr.bf16.mxu0 0
  %423 = vmatpush1.bf16.msra.mxu0 %v405
  %424 = vmatprep.subr.bf16.mxu0 0
  %425 = vmatpush1.bf16.msra.mxu0 %v406
  %426 = vmatprep.subr.bf16.mxu0 0
  %427 = vmatpush1.bf16.msra.mxu0 %v407
  %428 = vmatprep.subr.bf16.mxu0 0
  %429 = vmatpush1.bf16.msra.mxu0 %v408
  %430 = vmatprep.subr.bf16.mxu0 0
  %431 = vmatpush1.bf16.msra.mxu0 %v409
  %432 = vmatprep.subr.bf16.mxu0 0
  %433 = vmatpush1.bf16.msra.mxu0 %v410
  %434 = vmatprep.subr.bf16.mxu0 0
  %435 = vmatpush1.bf16.msra.mxu0 %v411
  %436 = vmatprep.subr.bf16.mxu0 0
  %437 = vmatpush1.bf16.msra.mxu0 0
  %438 = vmatprep.subr.bf16.mxu0 0
  %439 = vmatpush1.bf16.msra.mxu0 0
  %440 = vmatprep.subr.bf16.mxu0 0
  %441 = vmatpush1.bf16.msra.mxu0 0
  %442 = vmatprep.subr.bf16.mxu0 0
  %443 = vmatpush1.bf16.msra.mxu0 0
  %444 = vmatprep.subr.bf16.mxu0 0
  %445 = vmatpush1.bf16.msra.mxu0 0
  %446 = vmatprep.subr.bf16.mxu0 0
  %447 = vmatpush1.bf16.msra.mxu0 0
  %448 = vmatprep.subr.bf16.mxu0 0
  %449 = vmatpush1.bf16.msra.mxu0 0
  %450 = vmatprep.subr.bf16.mxu0 0
  %451 = vmatpush1.bf16.msra.mxu0 0
  %452 = vmatprep.mubr.bf16.mxu0 0
  %453 = vmatmul.mubr.bf16.gmra.mrb[0].mxu0 %v349
  %v454 = vpop.f32.mrb[0].mxu0
  %v455 = vadd.f32 %v371, %v454
  %v456 = vpop.f32.mrb[0].mxu0
  %v457 = vpop.f32.mrb[0].mxu0
  %v458 = vadd.f32 %v371, %v457
  %v459 = vpop.f32.mrb[0].mxu0
  %460 = vdwg.mxu0
  %v461 = vmax.f32 %v455, 0.0
  %v462 = vmax.f32 %v458, 0.0
  %v463 = vld [vmem:[%s4] sm:$0xff]
  %v464 = vld [vmem:[%s5] sm:$0xff]
  %466 = vset.pattern.permute.xlu0 0
  %467 = vperm.xlu0 %466, %v464
  %v468 = vpop.permute.xlu0 %467
  %470 = vmatprep.subr.mxu0 0.0
  %471 = vmatpush1.xpose.msra.mxu0 %v461
  %472 = vmatprep.subr.mxu0 0.0
  %473 = vmatpush1.xpose.msra.mxu0 %v462
  %474 = vmatprep.subr.mxu0 0.0
  %475 = vmatpush1.xpose.msra.mxu0 0.0
  %476 = vmatprep.subr.mxu0 0.0
  %477 = vmatpush1.xpose.msra.mxu0 0.0
  %478 = vmatprep.subr.mxu0 0.0
  %479 = vmatpush1.xpose.msra.mxu0 0.0
  %480 = vmatprep.subr.mxu0 0.0
  %481 = vmatpush1.xpose.msra.mxu0 0.0
  %482 = vmatprep.subr.mxu0 0.0
  %483 = vmatpush1.xpose.msra.mxu0 0.0
  %484 = vmatprep.subr.mxu0 0.0
  %485 = vmatpush1.xpose.msra.mxu0 0.0
  %486 = vmatprep.subr.mxu0 0.0
  %487 = vmatpush1.xpose.msra.mxu0 0.0
  %488 = vmatprep.subr.mxu0 0.0
  %489 = vmatpush1.xpose.msra.mxu0 0.0
  %490 = vmatprep.subr.mxu0 0.0
  %491 = vmatpush1.xpose.msra.mxu0 0.0
  %492 = vmatprep.subr.mxu0 0.0
  %493 = vmatpush1.xpose.msra.mxu0 0.0
  %494 = vmatprep.subr.mxu0 0.0
  %495 = vmatpush1.xpose.msra.mxu0 0.0
  %496 = vmatprep.subr.mxu0 0.0
  %497 = vmatpush1.xpose.msra.mxu0 0.0
  %498 = vmatprep.subr.mxu0 0.0
  %499 = vmatpush1.xpose.msra.mxu0 0.0
  %500 = vmatprep.subr.mxu0 0.0
  %501 = vmatpush1.xpose.msra.mxu0 0.0
  %502 = vmatprep.subr.mxu0 0.0
  %503 = vmatpush1.xpose.msra.mxu0 0.0
  %504 = vmatprep.subr.mxu0 0.0
  %505 = vmatpush1.xpose.msra.mxu0 0.0
  %506 = vmatprep.subr.mxu0 0.0
  %507 = vmatpush1.xpose.msra.mxu0 0.0
  %508 = vmatprep.subr.mxu0 0.0
  %509 = vmatpush1.xpose.msra.mxu0 0.0
  %510 = vmatprep.subr.mxu0 0.0
  %511 = vmatpush1.xpose.msra.mxu0 0.0
  %512 = vmatprep.subr.mxu0 0.0
  %513 = vmatpush1.xpose.msra.mxu0 0.0
  %514 = vmatprep.subr.mxu0 0.0
  %515 = vmatpush1.xpose.msra.mxu0 0.0
  %516 = vmatprep.subr.mxu0 0.0
  %517 = vmatpush1.xpose.msra.mxu0 0.0
  %518 = vmatprep.subr.mxu0 0.0
  %519 = vmatpush1.xpose.msra.mxu0 0.0
  %520 = vmatprep.subr.mxu0 0.0
  %521 = vmatpush1.xpose.msra.mxu0 0.0
  %522 = vmatprep.subr.mxu0 0.0
  %523 = vmatpush1.xpose.msra.mxu0 0.0
  %524 = vmatprep.subr.mxu0 0.0
  %525 = vmatpush1.xpose.msra.mxu0 0.0
  %526 = vmatprep.subr.mxu0 0.0
  %527 = vmatpush1.xpose.msra.mxu0 0.0
  %528 = vmatprep.subr.mxu0 0.0
  %529 = vmatpush1.xpose.msra.mxu0 0.0
  %530 = vmatprep.subr.mxu0 0.0
  %531 = vmatpush1.xpose.msra.mxu0 0.0
  %532 = vmatprep.subr.mxu0 0.0
  %533 = vmatpush1.xpose.msra.mxu0 0.0
  %534 = vmatprep.mubr.f32.mxu0 0.0
  %535 = vmatmul.mubr.f32.gmra.mrb[0].mxu0 %v463
  %v536 = vpop.f32.mrb[0].mxu0
  %v537 = vadd.f32 %v468, %v536
  %v538 = vpop.f32.mrb[0].mxu0
  %539 = vdwg.mxu0
  %vm540 = vcmask 130048
  %541 = vst.msk [vmem:[%s6] sm:$0xff] %vm540, %v537
  // Predicated region
  $region26: #{position_forward.1} parent=0 // pred_check
    _
  $region27: #{position_forward.1} parent=0 // pred_check_branch
    %543 = sbr.rel (0) target = $region29
  $region28: #{position_forward.1} parent=0 // pred_region
    _
  $region29: #{position_forward.1} parent=0 // pred_fallthru
    _
  // Predicated region
  $region30: #{position_forward.1} parent=0 // pred_check
    _
  $region31: #{position_forward.1} parent=0 // pred_check_branch
    %545 = sbr.rel (0) target = $region33
  $region32: #{position_forward.1} parent=0 // pred_region
    _
  $region33: #{position_forward.1} parent=0 // pred_fallthru
    _

</llo_original>
